<compile_context>
chip_gen: v7x
topology: tpu7x:2x2x1
jax: 0.10.0
libtpu: 0.0.40
codegen_flags: <defaults>
</compile_context>

<pallas_src>
import functools
import math

import jax
import jax.numpy as jnp
import numpy as np
from jax.experimental import pallas as pl
from jax.experimental.pallas import tpu as pltpu

HIDDEN = 256
HEAD_LANES = 128            # lane width of the output slab / each head half
LOG_2PI = math.log(2.0 * math.pi)
LOG_2 = math.log(2.0)


def _round_up(n, m):
    return ((n + m - 1) // m) * m


def actor_kernel(x_ref, eps_ref, w1_ref, b1_ref, w2_ref, b2_ref,
                 wh_ref, bh_ref, out_ref, *, action_size):
    A = action_size

    # ---- trunk: bf16 MXU matmuls, fp32 accumulate / bias / relu ----
    h = jnp.dot(x_ref[...], w1_ref[...], preferred_element_type=jnp.float32)
    h = jnp.maximum(h + b1_ref[...], 0.0)
    h = jnp.dot(h.astype(jnp.bfloat16), w2_ref[...],
                preferred_element_type=jnp.float32)
    h = jnp.maximum(h + b2_ref[...], 0.0)

    # ---- fused heads: ONE (HIDDEN, 256) matmul.
    #      lanes [0, A)           -> mu
    #      lanes [128, 128 + A)   -> logstd
    #      all other lanes        -> exact 0 (zero-padded weights + bias)
    head = jnp.dot(h.astype(jnp.bfloat16), wh_ref[...],
                   preferred_element_type=jnp.float32) + bh_ref[...]

    # vreg-boundary slices: no lane shuffles.
    mu = head[:, :HEAD_LANES]                               # (TB, 128)
    logstd = jnp.clip(head[:, HEAD_LANES:], -20.0, 2.0)     # (TB, 128); pad lanes -> 0
    std = jnp.exp(logstd)                                   # pad lanes -> 1

    eps = eps_ref[...]                                      # (TB, 128); lanes >= A are 0
    raw = mu + std * eps                                    # reparameterized sample
    action = jnp.tanh(raw)

    # Normal(mu, std).log_prob(raw); (raw - mu) / std == eps by construction.
    normal_lp = -0.5 * jnp.square(eps) - logstd - 0.5 * LOG_2PI
    # tanh-squash Jacobian correction (stable softplus form, as in _squash_action)
    jacob = 2.0 * (LOG_2 - raw - jax.nn.softplus(-2.0 * raw))

    lane = jax.lax.broadcasted_iota(jnp.int32, mu.shape, 1)
    in_act = lane < A
    per_lane = jnp.where(in_act, normal_lp - jacob, 0.0)
    logp = jnp.sum(per_lane, axis=1, keepdims=True)         # (TB, 1)

    # ---- single unmasked full-slab store:
    #      lanes [0, A) = action, lanes >= A = log_prob (replicated, never read
    #      beyond lane A by the wrapper).
    out_ref[...] = jnp.where(in_act, action, jnp.broadcast_to(logp, mu.shape))


def prepare_actor_params(params):
    """Turn fp32 (in, out)-layout params into kernel-ready padded / bf16 tensors."""
    w1, b1 = params["w1"], params["b1"]
    w2, b2 = params["w2"], params["b2"]
    wmu, bmu = params["wmu"], params["bmu"]
    wls, bls = params["wls"], params["bls"]

    obs = w1.shape[0]
    A = wmu.shape[1]
    assert A < HEAD_LANES, "action_size must leave one lane for log_prob"

    obs_p = _round_up(obs, 16)                               # aligned K for bf16 matmul
    w1p = jnp.pad(w1, ((0, obs_p - obs), (0, 0)))            # zero rows: no numeric effect

    # fused head: [wmu | 0] in lanes [0,128), [wls | 0] in lanes [128,256)
    pad_a = HEAD_LANES - A
    wh = jnp.concatenate([jnp.pad(wmu, ((0, 0), (0, pad_a))),
                          jnp.pad(wls, ((0, 0), (0, pad_a)))], axis=1)
    bh = jnp.concatenate([jnp.pad(bmu, ((0, 0), (0, pad_a))),
                          jnp.pad(bls, ((0, 0), (0, pad_a)))], axis=1)

    return dict(
        w1=w1p.astype(jnp.bfloat16), b1=b1.astype(jnp.float32),
        w2=w2.astype(jnp.bfloat16), b2=b2.astype(jnp.float32),
        wh=wh.astype(jnp.bfloat16), bh=bh.astype(jnp.float32),
        obs=obs, obs_p=obs_p, A=A,
    )


def _choose_batch_tile(B, block_b):
    """Large tiles amortize per-step overhead; for bigger batches keep >= 2
    grid steps so both TensorCores get work on megacore / v7x parts."""
    block_b = max(8, _round_up(block_b, 8))
    if B <= 256:
        return _round_up(max(B, 1), 8)
    half = _round_up((B + 1) // 2, 8)
    return min(block_b, half)


def actor_forward(x, eps, kp, *, block_b=1024):
    """Actor.forward(x, with_log_prob=True, deterministic=False).

    kp = prepare_actor_params(params); eps is standard-normal noise (B, A).
    Returns (squashed_action (B, A) fp32, log_prob (B, 1) fp32).
    """
    B, obs = x.shape
    A = kp["A"]
    obs_p = kp["obs_p"]
    assert eps.shape == (B, A) and obs == kp["obs"]

    tb = _choose_batch_tile(B, block_b)
    bp = _round_up(B, tb)

    # cast first, then pad (no intermediate padded fp32 copy of x)
    x_p = jnp.pad(x.astype(jnp.bfloat16), ((0, bp - B), (0, obs_p - obs)))
    # dense 128-lane eps stream: lanes >= A are zero (dense DMA, no strided
    # sublane writes; doubles as the 128-wide eps operand in-kernel)
    eps_p = jnp.pad(eps.astype(jnp.float32),
                    ((0, bp - B), (0, HEAD_LANES - A)))

    const = lambda i: (0, 0)        # weights/biases: same block every step -> VMEM-resident

    out = pl.pallas_call(
        functools.partial(actor_kernel, action_size=A),
        out_shape=jax.ShapeDtypeStruct((bp, HEAD_LANES), jnp.float32),
        grid_spec=pltpu.PrefetchScalarGridSpec(
            num_scalar_prefetch=0,
            grid=(bp // tb,),
            in_specs=[
                pl.BlockSpec((tb, obs_p), lambda i: (i, 0)),            # x
                pl.BlockSpec((tb, HEAD_LANES), lambda i: (i, 0)),       # eps (dense)
                pl.BlockSpec((obs_p, HIDDEN), const),                   # w1
                pl.BlockSpec((1, HIDDEN), const),                       # b1
                pl.BlockSpec((HIDDEN, HIDDEN), const),                  # w2
                pl.BlockSpec((1, HIDDEN), const),                       # b2
                pl.BlockSpec((HIDDEN, 2 * HEAD_LANES), const),          # fused head W
                pl.BlockSpec((1, 2 * HEAD_LANES), const),               # fused head b
            ],
            out_specs=pl.BlockSpec((tb, HEAD_LANES), lambda i: (i, 0)),
        ),
        compiler_params=pltpu.CompilerParams(
            dimension_semantics=("parallel",),      # shard batch tiles across TCs
        ),
    )(x_p, eps_p, kp["w1"], kp["b1"], kp["w2"], kp["b2"], kp["wh"], kp["bh"])

    action = out[:B, :A]
    log_prob = out[:B, A:A + 1]
    return action, log_prob


def init_params(key, observation_size, action_size):
    """Deterministic init mimicking PyTorch nn.Linear default (uniform +-1/sqrt(fan_in))."""
    def linear(k, fan_in, fan_out):
        kw, kb = jax.random.split(k)
        bound = 1.0 / math.sqrt(fan_in)
        w = jax.random.uniform(kw, (fan_in, fan_out), jnp.float32, -bound, bound)
        b = jax.random.uniform(kb, (1, fan_out), jnp.float32, -bound, bound)
        return w, b

    k1, k2, k3, k4 = jax.random.split(key, 4)
    w1, b1 = linear(k1, observation_size, HIDDEN)
    w2, b2 = linear(k2, HIDDEN, HIDDEN)
    wmu, bmu = linear(k3, HIDDEN, action_size)
    wls, bls = linear(k4, HIDDEN, action_size)
    return dict(w1=w1, b1=b1, w2=w2, b2=b2,
                wmu=wmu, bmu=bmu, wls=wls, bls=bls)


def actor_reference(x, eps, p):
    """Pure-JAX reference using the same bf16-matmul / fp32-accumulate recipe."""
    bf, f32 = jnp.bfloat16, jnp.float32
    h = jnp.dot(x.astype(bf), p["w1"].astype(bf), preferred_element_type=f32) + p["b1"]
    h = jax.nn.relu(h)
    h = jnp.dot(h.astype(bf), p["w2"].astype(bf), preferred_element_type=f32) + p["b2"]
    h = jax.nn.relu(h)
    mu = jnp.dot(h.astype(bf), p["wmu"].astype(bf), preferred_element_type=f32) + p["bmu"]
    logstd = jnp.dot(h.astype(bf), p["wls"].astype(bf), preferred_element_type=f32) + p["bls"]
    logstd = jnp.clip(logstd, -20.0, 2.0)
    std = jnp.exp(logstd)
    raw = mu + std * eps
    squashed = jnp.tanh(raw)
    normal_lp = -0.5 * jnp.square((raw - mu) / std) - logstd - 0.5 * jnp.log(2.0 * jnp.pi)
    jacob = 2.0 * (jnp.log(2.0) - raw - jax.nn.softplus(-2.0 * raw))
    logp = jnp.sum(normal_lp - jacob, axis=1, keepdims=True)
    return squashed, logp


if __name__ == "__main__":
    B = 2                 # batch
    OBS = 16              # observation_size
    ACT = 4               # action_size

    root = jax.random.PRNGKey(0)
    k_params, k_x, k_eps = jax.random.split(root, 3)

    params = init_params(k_params, OBS, ACT)
    x = jax.random.normal(k_x, (B, OBS), dtype=jnp.float32)
    eps = jax.random.normal(k_eps, (B, ACT), dtype=jnp.float32)   # rsample noise

    kernel_params = prepare_actor_params(params)
    action, log_prob = actor_forward(x, eps, kernel_params)
    action = jax.block_until_ready(action)
    log_prob = jax.block_until_ready(log_prob)

    ref_action, ref_logp = actor_reference(x, eps, params)
    np.testing.assert_allclose(np.asarray(action), np.asarray(ref_action),
                               rtol=1e-4, atol=1e-4)
    np.testing.assert_allclose(np.asarray(log_prob), np.asarray(ref_logp),
                               rtol=1e-4, atol=1e-4)

    print("KERNEL_OK")
</pallas_src>

<mosaic_0001>
module attributes {stable_mosaic.version = 11 : i64} {
  func.func @actor_kernel(%arg0: i32, %arg1: memref<8x16xbf16, #tpu.memory_space<vmem>>, %arg2: memref<8x128xf32, #tpu.memory_space<vmem>>, %arg3: memref<16x256xbf16, #tpu.memory_space<vmem>>, %arg4: memref<1x256xf32, #tpu.memory_space<vmem>>, %arg5: memref<256x256xbf16, #tpu.memory_space<vmem>>, %arg6: memref<1x256xf32, #tpu.memory_space<vmem>>, %arg7: memref<256x256xbf16, #tpu.memory_space<vmem>>, %arg8: memref<1x256xf32, #tpu.memory_space<vmem>>, %arg9: memref<8x128xf32, #tpu.memory_space<vmem>>) attributes {dimension_semantics = [#tpu.dimension_semantics<parallel>], iteration_bounds = array<i64: 1>, scalar_prefetch = 0 : i64, scratch_operands = 0 : i64, tpu.core_type = #tpu.core_type<tc>, window_params = [{transform_indices = @transform_0, window_bounds = array<i64: 8, 16>}, {transform_indices = @transform_1, window_bounds = array<i64: 8, 128>}, {pipeline_mode = #tpu.pipeline_mode<synchronous>, transform_indices = @transform_2, window_bounds = array<i64: 16, 256>}, {pipeline_mode = #tpu.pipeline_mode<synchronous>, transform_indices = @transform_3, window_bounds = array<i64: 1, 256>}, {pipeline_mode = #tpu.pipeline_mode<synchronous>, transform_indices = @transform_4, window_bounds = array<i64: 256, 256>}, {pipeline_mode = #tpu.pipeline_mode<synchronous>, transform_indices = @transform_5, window_bounds = array<i64: 1, 256>}, {pipeline_mode = #tpu.pipeline_mode<synchronous>, transform_indices = @transform_6, window_bounds = array<i64: 256, 256>}, {pipeline_mode = #tpu.pipeline_mode<synchronous>, transform_indices = @transform_7, window_bounds = array<i64: 1, 256>}, {transform_indices = @transform_8, window_bounds = array<i64: 8, 128>}]} {
    %c0 = arith.constant 0 : index
    %c0_0 = arith.constant 0 : index
    %0 = vector.load %arg1[%c0, %c0_0] : memref<8x16xbf16, #tpu.memory_space<vmem>>, vector<8x16xbf16>
    %c0_1 = arith.constant 0 : index
    %c0_2 = arith.constant 0 : index
    %1 = vector.load %arg3[%c0_1, %c0_2] : memref<16x256xbf16, #tpu.memory_space<vmem>>, vector<16x256xbf16>
    %cst = arith.constant dense<0.000000e+00> : vector<8x256xf32>
    %2 = tpu.matmul %0, %1, %cst {dimension_numbers = #tpu.dot_dimension_numbers<[1], [0], [0], [1], [0, 0, 1, 1], [], []>} : vector<8x16xbf16>, vector<16x256xbf16>, vector<8x256xf32> -> vector<8x256xf32>
    %c0_3 = arith.constant 0 : index
    %c0_4 = arith.constant 0 : index
    %3 = vector.load %arg4[%c0_3, %c0_4] : memref<1x256xf32, #tpu.memory_space<vmem>>, vector<1x256xf32>
    %4 = vector.broadcast %3 : vector<1x256xf32> to vector<8x256xf32>
    %5 = arith.addf %2, %4 : vector<8x256xf32>
    %cst_5 = arith.constant 0.000000e+00 : f32
    %6 = vector.broadcast %cst_5 : f32 to vector<8x256xf32>
    %7 = arith.maximumf %5, %6 : vector<8x256xf32>
    %8 = arith.truncf %7 : vector<8x256xf32> to vector<8x256xbf16>
    %c0_6 = arith.constant 0 : index
    %c0_7 = arith.constant 0 : index
    %9 = vector.load %arg5[%c0_6, %c0_7] : memref<256x256xbf16, #tpu.memory_space<vmem>>, vector<256x256xbf16>
    %cst_8 = arith.constant dense<0.000000e+00> : vector<8x256xf32>
    %10 = tpu.matmul %8, %9, %cst_8 {dimension_numbers = #tpu.dot_dimension_numbers<[1], [0], [0], [1], [0, 0, 1, 1], [], []>} : vector<8x256xbf16>, vector<256x256xbf16>, vector<8x256xf32> -> vector<8x256xf32>
    %c0_9 = arith.constant 0 : index
    %c0_10 = arith.constant 0 : index
    %11 = vector.load %arg6[%c0_9, %c0_10] : memref<1x256xf32, #tpu.memory_space<vmem>>, vector<1x256xf32>
    %12 = vector.broadcast %11 : vector<1x256xf32> to vector<8x256xf32>
    %13 = arith.addf %10, %12 : vector<8x256xf32>
    %cst_11 = arith.constant 0.000000e+00 : f32
    %14 = vector.broadcast %cst_11 : f32 to vector<8x256xf32>
    %15 = arith.maximumf %13, %14 : vector<8x256xf32>
    %16 = arith.truncf %15 : vector<8x256xf32> to vector<8x256xbf16>
    %c0_12 = arith.constant 0 : index
    %c0_13 = arith.constant 0 : index
    %17 = vector.load %arg7[%c0_12, %c0_13] : memref<256x256xbf16, #tpu.memory_space<vmem>>, vector<256x256xbf16>
    %cst_14 = arith.constant dense<0.000000e+00> : vector<8x256xf32>
    %18 = tpu.matmul %16, %17, %cst_14 {dimension_numbers = #tpu.dot_dimension_numbers<[1], [0], [0], [1], [0, 0, 1, 1], [], []>} : vector<8x256xbf16>, vector<256x256xbf16>, vector<8x256xf32> -> vector<8x256xf32>
    %c0_15 = arith.constant 0 : index
    %c0_16 = arith.constant 0 : index
    %19 = vector.load %arg8[%c0_15, %c0_16] : memref<1x256xf32, #tpu.memory_space<vmem>>, vector<1x256xf32>
    %20 = vector.broadcast %19 : vector<1x256xf32> to vector<8x256xf32>
    %21 = arith.addf %18, %20 : vector<8x256xf32>
    %22 = vector.extract_strided_slice %21 {offsets = [0, 0], sizes = [8, 128], strides = [1, 1]} : vector<8x256xf32> to vector<8x128xf32>
    %23 = vector.extract_strided_slice %21 {offsets = [0, 128], sizes = [8, 128], strides = [1, 1]} : vector<8x256xf32> to vector<8x128xf32>
    %cst_17 = arith.constant -2.000000e+01 : f32
    %cst_18 = arith.constant 2.000000e+00 : f32
    %24 = vector.broadcast %cst_17 : f32 to vector<8x128xf32>
    %25 = arith.maximumf %24, %23 : vector<8x128xf32>
    %26 = vector.broadcast %cst_18 : f32 to vector<8x128xf32>
    %27 = arith.minimumf %26, %25 : vector<8x128xf32>
    %28 = math.exp %27 : vector<8x128xf32>
    %c0_19 = arith.constant 0 : index
    %c0_20 = arith.constant 0 : index
    %29 = vector.load %arg2[%c0_19, %c0_20] : memref<8x128xf32, #tpu.memory_space<vmem>>, vector<8x128xf32>
    %30 = arith.mulf %28, %29 : vector<8x128xf32>
    %31 = arith.addf %22, %30 : vector<8x128xf32>
    %32 = math.tanh %31 : vector<8x128xf32>
    %33 = arith.mulf %29, %29 : vector<8x128xf32>
    %cst_21 = arith.constant -5.000000e-01 : f32
    %34 = vector.broadcast %cst_21 : f32 to vector<8x128xf32>
    %35 = arith.mulf %34, %33 : vector<8x128xf32>
    %36 = arith.subf %35, %27 : vector<8x128xf32>
    %cst_22 = arith.constant 0.918938517 : f32
    %37 = vector.broadcast %cst_22 : f32 to vector<8x128xf32>
    %38 = arith.subf %36, %37 : vector<8x128xf32>
    %cst_23 = arith.constant 0.693147182 : f32
    %39 = vector.broadcast %cst_23 : f32 to vector<8x128xf32>
    %40 = arith.subf %39, %31 : vector<8x128xf32>
    %cst_24 = arith.constant -2.000000e+00 : f32
    %41 = vector.broadcast %cst_24 : f32 to vector<8x128xf32>
    %42 = arith.mulf %41, %31 : vector<8x128xf32>
    %cst_25 = arith.constant 0.000000e+00 : f32
    %43 = vector.broadcast %cst_25 : f32 to vector<8x128xf32>
    %44 = arith.maximumf %42, %43 : vector<8x128xf32>
    %45 = vector.broadcast %cst_25 : f32 to vector<8x128xf32>
    %46 = arith.subf %42, %45 : vector<8x128xf32>
    %47 = arith.cmpf one, %46, %46 : vector<8x128xf32>
    %48 = vector.broadcast %cst_25 : f32 to vector<8x128xf32>
    %49 = arith.addf %42, %48 : vector<8x128xf32>
    %50 = math.absf %46 : vector<8x128xf32>
    %cst_26 = arith.constant 0.000000e+00 : f32
    %51 = vector.broadcast %cst_26 : f32 to vector<8x128xf32>
    %52 = arith.subf %51, %50 : vector<8x128xf32>
    %53 = math.exp %52 : vector<8x128xf32>
    %54 = math.log1p %53 : vector<8x128xf32>
    %55 = arith.addf %44, %54 : vector<8x128xf32>
    %56 = arith.select %47, %49, %55 : vector<8x128xi1>, vector<8x128xf32>
    %57 = arith.subf %40, %56 : vector<8x128xf32>
    %cst_27 = arith.constant 2.000000e+00 : f32
    %58 = vector.broadcast %cst_27 : f32 to vector<8x128xf32>
    %59 = arith.mulf %58, %57 : vector<8x128xf32>
    %60 = tpu.iota {dimensions = array<i32: 1>} : vector<8x128xi32>
    %c4_i32 = arith.constant 4 : i32
    %61 = vector.broadcast %c4_i32 : i32 to vector<8x128xi32>
    %62 = arith.cmpi slt, %60, %61 : vector<8x128xi32>
    %63 = arith.subf %38, %59 : vector<8x128xf32>
    %cst_28 = arith.constant 0.000000e+00 : f32
    %64 = vector.broadcast %cst_28 : f32 to vector<8x128xf32>
    %65 = arith.select %62, %63, %64 : vector<8x128xi1>, vector<8x128xf32>
    %cst_29 = arith.constant dense<0.000000e+00> : vector<8xf32>
    %66 = vector.multi_reduction <add>, %65, %cst_29 [1] : vector<8x128xf32> to vector<8xf32>
    %67 = vector.shape_cast %66 : vector<8xf32> to vector<8x1xf32>
    %68 = vector.shape_cast %67 : vector<8x1xf32> to vector<8x1xf32>
    %69 = vector.broadcast %68 : vector<8x1xf32> to vector<8x128xf32>
    %70 = arith.select %62, %32, %69 : vector<8x128xi1>, vector<8x128xf32>
    %c0_30 = arith.constant 0 : index
    %c0_31 = arith.constant 0 : index
    %71 = vector.load %arg9[%c0_30, %c0_31] : memref<8x128xf32, #tpu.memory_space<vmem>>, vector<8x128xf32>
    tpu.vector_store %arg9[%c0_30, %c0_31], %70 {strides = array<i32>} : memref<8x128xf32, #tpu.memory_space<vmem>>, vector<8x128xf32>,
    return
  }
  func.func @transform_0(%arg0: i32) -> (i32, i32) {
    %c0_i32 = arith.constant 0 : i32
    %c0_i32_0 = arith.constant 0 : i32
    return %arg0, %c0_i32 : i32, i32
  }
  func.func @transform_1(%arg0: i32) -> (i32, i32) {
    %c0_i32 = arith.constant 0 : i32
    %c0_i32_0 = arith.constant 0 : i32
    return %arg0, %c0_i32 : i32, i32
  }
  func.func @transform_2(%arg0: i32) -> (i32, i32) {
    %c0_i32 = arith.constant 0 : i32
    %c0_i32_0 = arith.constant 0 : i32
    %c0_i32_1 = arith.constant 0 : i32
    return %c0_i32, %c0_i32_0 : i32, i32
  }
  func.func @transform_3(%arg0: i32) -> (i32, i32) {
    %c0_i32 = arith.constant 0 : i32
    %c0_i32_0 = arith.constant 0 : i32
    %c0_i32_1 = arith.constant 0 : i32
    return %c0_i32, %c0_i32_0 : i32, i32
  }
  func.func @transform_4(%arg0: i32) -> (i32, i32) {
    %c0_i32 = arith.constant 0 : i32
    %c0_i32_0 = arith.constant 0 : i32
    %c0_i32_1 = arith.constant 0 : i32
    return %c0_i32, %c0_i32_0 : i32, i32
  }
  func.func @transform_5(%arg0: i32) -> (i32, i32) {
    %c0_i32 = arith.constant 0 : i32
    %c0_i32_0 = arith.constant 0 : i32
    %c0_i32_1 = arith.constant 0 : i32
    return %c0_i32, %c0_i32_0 : i32, i32
  }
  func.func @transform_6(%arg0: i32) -> (i32, i32) {
    %c0_i32 = arith.constant 0 : i32
    %c0_i32_0 = arith.constant 0 : i32
    %c0_i32_1 = arith.constant 0 : i32
    return %c0_i32, %c0_i32_0 : i32, i32
  }
  func.func @transform_7(%arg0: i32) -> (i32, i32) {
    %c0_i32 = arith.constant 0 : i32
    %c0_i32_0 = arith.constant 0 : i32
    %c0_i32_1 = arith.constant 0 : i32
    return %c0_i32, %c0_i32_0 : i32, i32
  }
  func.func @transform_8(%arg0: i32) -> (i32, i32) {
    %c0_i32 = arith.constant 0 : i32
    %c0_i32_0 = arith.constant 0 : i32
    return %arg0, %c0_i32 : i32, i32
  }
}

</mosaic_0001>

<llo_original>
// kernel: tpu_custom_call.1
$region0: #{tpu_custom_call.1}
  #allocation0 [shape = 'u32[]', space=smem, size = 0x4, offset = 0x4, fixed_abs, tag = 'smem constant byte address 0x4 - core index']
  #allocation1 [shape = 'u32[144,128]{1,0:T(1,128)}', space=vmem, size = 0x12000, scoped, tag = 'internal scratch']
  %s0 = inlined_call_operand.hbm [shape: bf16[8,16], index: 0, kind: input, shape index: {}]
  %s1 = inlined_call_operand.hbm [shape: f32[8,128], index: 1, kind: input, shape index: {}]
  %s2 = inlined_call_operand.hbm [shape: bf16[16,256], index: 2, kind: input, shape index: {}]
  %s3 = inlined_call_operand.vmem [shape: f32[1,256], index: 3, kind: input, shape index: {}]
  %s4 = inlined_call_operand.hbm [shape: bf16[256,256], index: 4, kind: input, shape index: {}]
  %s5 = inlined_call_operand.vmem [shape: f32[1,256], index: 5, kind: input, shape index: {}]
  %s6 = inlined_call_operand.hbm [shape: bf16[256,256], index: 6, kind: input, shape index: {}]
  %s7 = inlined_call_operand.vmem [shape: f32[1,256], index: 7, kind: input, shape index: {}]
  %s8 = inlined_call_operand.hbm [shape: f32[8,128], index: 8, kind: output, shape index: {}]
  %s9 = sld [smem:[#allocation0]]
  $region62: #{tpu_custom_call.1} parent=0
    _
  %s11 = ssub.s32 1, %s9
  %s12 = scalar_select 0, %s11, %s9
  $region1: #{tpu_custom_call.1} parent=0
    #allocation2 [shape = 'u8[2048]{0}', space=vmem, size = 0x800, scoped, tag = 'input window, operand 0, single buffered']
    #allocation3 [shape = 's32[1]{0}', space=sflag, size = 0x4, scoped, tag = 'scoped memory for tpu_custom_call.1']
    #allocation4 [shape = 's32[1]{0}', space=sflag, size = 0x4, scoped, tag = 'scoped memory for tpu_custom_call.1']
    #allocation5 [shape = 'u8[4096]{0}', space=vmem, size = 0x1000, scoped, tag = 'input window, operand 1, single buffered']
    #allocation6 [shape = 's32[1]{0}', space=sflag, size = 0x4, scoped, tag = 'scoped memory for tpu_custom_call.1']
    #allocation7 [shape = 'u8[8192]{0}', space=vmem, size = 0x2000, scoped, tag = 'input window, operand 2, single buffered']
    #allocation8 [shape = 'u8[131072]{0}', space=vmem, size = 0x20000, scoped, tag = 'input window, operand 4, single buffered']
    #allocation9 [shape = 's32[1]{0}', space=sflag, size = 0x4, scoped, tag = 'scoped memory for tpu_custom_call.1']
    #allocation10 [shape = 'u8[131072]{0}', space=vmem, size = 0x20000, scoped, tag = 'input window, operand 6, single buffered']
    #allocation11 [shape = 'u8[4096]{0}', space=vmem, size = 0x1000, scoped, tag = 'output window, operand 0, single buffered']
    %13 = vsyncpa [#allocation3], 0
    %14 = vsyncpa [#allocation6], 0
    %15 = vsyncpa [#allocation9], 0
    %16 = vsyncpa [#allocation4], 0
    // Predicated region
    $region2: #{tpu_custom_call.1} parent=1 // pred_check
      _
    $region3: #{tpu_custom_call.1} parent=1 // pred_check_branch
      %18 = sbr.rel (0) target = $region5
    $region4: #{tpu_custom_call.1} parent=1 // pred_region
      %s20 = ssub.s32 64, 64
      %21 = vsyncadd [#allocation3], %s20
      %s23 = sshll.u32 [#allocation2], 4
      %s24 = int_to_ptr.vmem [resolvable:$true] %s23
      %26 = dma.hbm_to_vmem [thread:$0]  %s0, 64, %s24, [#allocation3]
    $region5: #{tpu_custom_call.1} parent=1 // pred_fallthru
      _
    // Predicated region
    $region6: #{tpu_custom_call.1} parent=1 // pred_check
      _
    $region7: #{tpu_custom_call.1} parent=1 // pred_check_branch
      %28 = sbr.rel (0) target = $region9
    $region8: #{tpu_custom_call.1} parent=1 // pred_region
      %s30 = ssub.s32 128, 128
      %31 = vsyncadd [#allocation6], %s30
      %s33 = sshll.u32 [#allocation5], 4
      %s34 = int_to_ptr.vmem [resolvable:$true] %s33
      %36 = dma.hbm_to_vmem [thread:$0]  %s1, 128, %s34, [#allocation6]
    $region9: #{tpu_custom_call.1} parent=1 // pred_fallthru
      _
    // Predicated region
    $region10: #{tpu_custom_call.1} parent=1 // pred_check
      _
    $region11: #{tpu_custom_call.1} parent=1 // pred_check_branch
      %38 = sbr.rel (0) target = $region13
    $region12: #{tpu_custom_call.1} parent=1 // pred_region
      %s40 = ssub.s32 256, 256
      %41 = vsyncadd [#allocation6], %s40
      %s42 = sshll.u32 [#allocation7], 4
      %s43 = int_to_ptr.vmem [resolvable:$true] %s42
      %48 = dma.hbm_to_vmem [thread:$0]  %s2, 256, %s43, [#allocation6], 128, 128, 8
    $region13: #{tpu_custom_call.1} parent=1 // pred_fallthru
      _
    // Predicated region
    $region14: #{tpu_custom_call.1} parent=1 // pred_check
      _
    $region15: #{tpu_custom_call.1} parent=1 // pred_check_branch
      %50 = sbr.rel (0) target = $region17
    $region16: #{tpu_custom_call.1} parent=1 // pred_region
      _
    $region17: #{tpu_custom_call.1} parent=1 // pred_fallthru
      _
    // Predicated region
    $region18: #{tpu_custom_call.1} parent=1 // pred_check
      _
    $region19: #{tpu_custom_call.1} parent=1 // pred_check_branch
      %52 = sbr.rel (0) target = $region21
    $region20: #{tpu_custom_call.1} parent=1 // pred_region
      %s54 = ssub.s32 4096, 4096
      %55 = vsyncadd [#allocation9], %s54
      %s56 = sshll.u32 [#allocation8], 4
      %s57 = int_to_ptr.vmem [resolvable:$true] %s56
      %62 = dma.hbm_to_vmem [thread:$0]  %s4, 4096, %s57, [#allocation9], 128, 128, 8
    $region21: #{tpu_custom_call.1} parent=1 // pred_fallthru
      _
    // Predicated region
    $region22: #{tpu_custom_call.1} parent=1 // pred_check
      _
    $region23: #{tpu_custom_call.1} parent=1 // pred_check_branch
      %64 = sbr.rel (0) target = $region25
    $region24: #{tpu_custom_call.1} parent=1 // pred_region
      _
    $region25: #{tpu_custom_call.1} parent=1 // pred_fallthru
      _
    // Predicated region
    $region26: #{tpu_custom_call.1} parent=1 // pred_check
      _
    $region27: #{tpu_custom_call.1} parent=1 // pred_check_branch
      %66 = sbr.rel (0) target = $region29
    $region28: #{tpu_custom_call.1} parent=1 // pred_region
      %s68 = ssub.s32 4096, 4096
      %69 = vsyncadd [#allocation9], %s68
      %s70 = sshll.u32 [#allocation10], 4
      %s71 = int_to_ptr.vmem [resolvable:$true] %s70
      %76 = dma.hbm_to_vmem [thread:$0]  %s6, 4096, %s71, [#allocation9], 128, 128, 8
    $region29: #{tpu_custom_call.1} parent=1 // pred_fallthru
      _
    // Predicated region
    $region30: #{tpu_custom_call.1} parent=1 // pred_check
      _
    $region31: #{tpu_custom_call.1} parent=1 // pred_check_branch
      %78 = sbr.rel (0) target = $region33
    $region32: #{tpu_custom_call.1} parent=1 // pred_region
      _
    $region33: #{tpu_custom_call.1} parent=1 // pred_fallthru
      _
    // Predicated region
    $region34: #{tpu_custom_call.1} parent=1 // pred_check
      _
    $region35: #{tpu_custom_call.1} parent=1 // pred_check_branch
      %80 = sbr.rel (0) target = $region37
    $region36: #{tpu_custom_call.1} parent=1 // pred_region
      %81 = dma.done [#allocation3], 64
    $region37: #{tpu_custom_call.1} parent=1 // pred_fallthru
      _
    // Predicated region
    $region38: #{tpu_custom_call.1} parent=1 // pred_check
      _
    $region39: #{tpu_custom_call.1} parent=1 // pred_check_branch
      %83 = sbr.rel (0) target = $region41
    $region40: #{tpu_custom_call.1} parent=1 // pred_region
      %84 = dma.done [#allocation6], 128
    $region41: #{tpu_custom_call.1} parent=1 // pred_fallthru
      _
    // Predicated region
    $region42: #{tpu_custom_call.1} parent=1 // pred_check
      _
    $region43: #{tpu_custom_call.1} parent=1 // pred_check_branch
      %86 = sbr.rel (0) target = $region45
    $region44: #{tpu_custom_call.1} parent=1 // pred_region
      %87 = dma.done [#allocation6], 256
    $region45: #{tpu_custom_call.1} parent=1 // pred_fallthru
      _
    // Predicated region
    $region46: #{tpu_custom_call.1} parent=1 // pred_check
      _
    $region47: #{tpu_custom_call.1} parent=1 // pred_check_branch
      %89 = sbr.rel (0) target = $region49
    $region48: #{tpu_custom_call.1} parent=1 // pred_region
      %90 = dma.done [#allocation9], 4096
    $region49: #{tpu_custom_call.1} parent=1 // pred_fallthru
      _
    // Predicated region
    $region50: #{tpu_custom_call.1} parent=1 // pred_check
      _
    $region51: #{tpu_custom_call.1} parent=1 // pred_check_branch
      %92 = sbr.rel (0) target = $region53
    $region52: #{tpu_custom_call.1} parent=1 // pred_region
      %93 = dma.done [#allocation9], 4096
    $region53: #{tpu_custom_call.1} parent=1 // pred_fallthru
      _
    %v95 = vld [vmem:[#allocation2] sm:$0xf]
    %v96 = vld [vmem:[#allocation7] sm:$0xff]
    %v97 = vld [vmem:[#allocation7 + $0x8] sm:$0xff]
    %v98 = vld [vmem:[%s3] sm:$0x3]
    %v100 = vlaneseq
    %v101 = vshrl.u32 %v100, 7
    %v102 = vsub.s32 0, %v101
    %v103 = vrot.slane %v98, %v102
    %v104 = vlaneseq
    %v105 = vshrl.u32 %v104, 7
    %v106 = vsub.s32 1, %v105
    %v107 = vrot.slane %v98, %v106
    %v112 = vunpack.c.l.b16 %v96
    %v113 = vunpack.c.h.b16 %v96
    %v114 = vunpack.c.l.b16 %v97
    %v115 = vunpack.c.h.b16 %v97
    %v116 = vpack.c.b16 %v114, %v112
    %v117 = vpack.c.b16 %v115, %v113
    %vm120 = vcmask 130048
    %v122 = vsel %vm120, %v95, 0
    %124 = vmatprep.subr.bf16.mxu0 %v117
    %125 = vmatpush1.bf16.msra.mxu0 %v116
    %126 = vmatprep.subr.bf16.mxu0 0
    %127 = vmatpush1.bf16.msra.mxu0 0
    %128 = vmatprep.subr.bf16.mxu0 0
    %129 = vmatpush1.bf16.msra.mxu0 0
    %130 = vmatprep.subr.bf16.mxu0 0
    %131 = vmatpush1.bf16.msra.mxu0 0
    %132 = vmatprep.subr.bf16.mxu0 0
    %133 = vmatpush1.bf16.msra.mxu0 0
    %134 = vmatprep.subr.bf16.mxu0 0
    %135 = vmatpush1.bf16.msra.mxu0 0
    %136 = vmatprep.subr.bf16.mxu0 0
    %137 = vmatpush1.bf16.msra.mxu0 0
    %138 = vmatprep.subr.bf16.mxu0 0
    %139 = vmatpush1.bf16.msra.mxu0 0
    %140 = vmatprep.subr.bf16.mxu0 0
    %141 = vmatpush1.bf16.msra.mxu0 0
    %142 = vmatprep.subr.bf16.mxu0 0
    %143 = vmatpush1.bf16.msra.mxu0 0
    %144 = vmatprep.subr.bf16.mxu0 0
    %145 = vmatpush1.bf16.msra.mxu0 0
    %146 = vmatprep.subr.bf16.mxu0 0
    %147 = vmatpush1.bf16.msra.mxu0 0
    %148 = vmatprep.subr.bf16.mxu0 0
    %149 = vmatpush1.bf16.msra.mxu0 0
    %150 = vmatprep.subr.bf16.mxu0 0
    %151 = vmatpush1.bf16.msra.mxu0 0
    %152 = vmatprep.subr.bf16.mxu0 0
    %153 = vmatpush1.bf16.msra.mxu0 0
    %154 = vmatprep.subr.bf16.mxu0 0
    %155 = vmatpush1.bf16.msra.mxu0 0
    %156 = vmatprep.mubr.bf16.mxu0 0
    %157 = vmatmul.mubr.bf16.gmra.mrb[0].mxu0 %v122
    %v158 = vpop.f32.mrb[0].mxu0
    %v159 = vadd.f32 %v103, %v158
    %v160 = vpop.f32.mrb[0].mxu0
    %v161 = vadd.f32 %v107, %v160
    %v162 = vpop.f32.mrb[0].mxu0
    %v163 = vpop.f32.mrb[0].mxu0
    %164 = vdwg.mxu0
    %v165 = vmax.f32 %v159, 0.0
    %v166 = vmax.f32 %v161, 0.0
    %v167 = vpack.c.bf16 %v165, %v165
    %v168 = vpack.c.bf16 %v166, %v166
    %v169 = vld [vmem:[#allocation8] sm:$0xff]
    %v170 = vld [vmem:[#allocation8 + $0x8] sm:$0xff]
    %v171 = vld [vmem:[#allocation8 + $0x10] sm:$0xff]
    %v172 = vld [vmem:[#allocation8 + $0x18] sm:$0xff]
    %v173 = vld [vmem:[#allocation8 + $0x20] sm:$0xff]
    %v174 = vld [vmem:[#allocation8 + $0x28] sm:$0xff]
    %v175 = vld [vmem:[#allocation8 + $0x30] sm:$0xff]
    %v176 = vld [vmem:[#allocation8 + $0x38] sm:$0xff]
    %v177 = vld [vmem:[#allocation8 + $0x40] sm:$0xff]
    %v178 = vld [vmem:[#allocation8 + $0x48] sm:$0xff]
    %v179 = vld [vmem:[#allocation8 + $0x50] sm:$0xff]
    %v180 = vld [vmem:[#allocation8 + $0x58] sm:$0xff]
    %v181 = vld [vmem:[#allocation8 + $0x60] sm:$0xff]
    %v182 = vld [vmem:[#allocation8 + $0x68] sm:$0xff]
    %v183 = vld [vmem:[#allocation8 + $0x70] sm:$0xff]
    %v184 = vld [vmem:[#allocation8 + $0x78] sm:$0xff]
    %v185 = vld [vmem:[#allocation8 + $0x80] sm:$0xff]
    %v186 = vld [vmem:[#allocation8 + $0x88] sm:$0xff]
    %v187 = vld [vmem:[#allocation8 + $0x90] sm:$0xff]
    %v188 = vld [vmem:[#allocation8 + $0x98] sm:$0xff]
    %v189 = vld [vmem:[#allocation8 + $0xa0] sm:$0xff]
    %v190 = vld [vmem:[#allocation8 + $0xa8] sm:$0xff]
    %v191 = vld [vmem:[#allocation8 + $0xb0] sm:$0xff]
    %v192 = vld [vmem:[#allocation8 + $0xb8] sm:$0xff]
    %v193 = vld [vmem:[#allocation8 + $0xc0] sm:$0xff]
    %v194 = vld [vmem:[#allocation8 + $0xc8] sm:$0xff]
    %v195 = vld [vmem:[#allocation8 + $0xd0] sm:$0xff]
    %v196 = vld [vmem:[#allocation8 + $0xd8] sm:$0xff]
    %v197 = vld [vmem:[#allocation8 + $0xe0] sm:$0xff]
    %v198 = vld [vmem:[#allocation8 + $0xe8] sm:$0xff]
    %v199 = vld [vmem:[#allocation8 + $0xf0] sm:$0xff]
    %v200 = vld [vmem:[#allocation8 + $0xf8] sm:$0xff]
    %v201 = vld [vmem:[%s5] sm:$0x3]
    %v203 = vlaneseq
    %v204 = vshrl.u32 %v203, 7
    %v205 = vsub.s32 0, %v204
    %v206 = vrot.slane %v201, %v205
    %v207 = vlaneseq
    %v208 = vshrl.u32 %v207, 7
    %v209 = vsub.s32 1, %v208
    %v210 = vrot.slane %v201, %v209
    %v245 = vunpack.c.l.b16 %v169
    %v246 = vunpack.c.h.b16 %v169
    %v247 = vunpack.c.l.b16 %v170
    %v248 = vunpack.c.h.b16 %v170
    %v249 = vunpack.c.l.b16 %v171
    %v250 = vunpack.c.h.b16 %v171
    %v251 = vunpack.c.l.b16 %v172
    %v252 = vunpack.c.h.b16 %v172
    %v253 = vunpack.c.l.b16 %v173
    %v254 = vunpack.c.h.b16 %v173
    %v255 = vunpack.c.l.b16 %v174
    %v256 = vunpack.c.h.b16 %v174
    %v257 = vunpack.c.l.b16 %v175
    %v258 = vunpack.c.h.b16 %v175
    %v259 = vunpack.c.l.b16 %v176
    %v260 = vunpack.c.h.b16 %v176
    %v261 = vunpack.c.l.b16 %v177
    %v262 = vunpack.c.h.b16 %v177
    %v263 = vunpack.c.l.b16 %v178
    %v264 = vunpack.c.h.b16 %v178
    %v265 = vunpack.c.l.b16 %v179
    %v266 = vunpack.c.h.b16 %v179
    %v267 = vunpack.c.l.b16 %v180
    %v268 = vunpack.c.h.b16 %v180
    %v269 = vunpack.c.l.b16 %v181
    %v270 = vunpack.c.h.b16 %v181
    %v271 = vunpack.c.l.b16 %v182
    %v272 = vunpack.c.h.b16 %v182
    %v273 = vunpack.c.l.b16 %v183
    %v274 = vunpack.c.h.b16 %v183
    %v275 = vunpack.c.l.b16 %v184
    %v276 = vunpack.c.h.b16 %v184
    %v277 = vunpack.c.l.b16 %v185
    %v278 = vunpack.c.h.b16 %v185
    %v279 = vunpack.c.l.b16 %v186
    %v280 = vunpack.c.h.b16 %v186
    %v281 = vunpack.c.l.b16 %v187
    %v282 = vunpack.c.h.b16 %v187
    %v283 = vunpack.c.l.b16 %v188
    %v284 = vunpack.c.h.b16 %v188
    %v285 = vunpack.c.l.b16 %v189
    %v286 = vunpack.c.h.b16 %v189
    %v287 = vunpack.c.l.b16 %v190
    %v288 = vunpack.c.h.b16 %v190
    %v289 = vunpack.c.l.b16 %v191
    %v290 = vunpack.c.h.b16 %v191
    %v291 = vunpack.c.l.b16 %v192
    %v292 = vunpack.c.h.b16 %v192
    %v293 = vunpack.c.l.b16 %v193
    %v294 = vunpack.c.h.b16 %v193
    %v295 = vunpack.c.l.b16 %v194
    %v296 = vunpack.c.h.b16 %v194
    %v297 = vunpack.c.l.b16 %v195
    %v298 = vunpack.c.h.b16 %v195
    %v299 = vunpack.c.l.b16 %v196
    %v300 = vunpack.c.h.b16 %v196
    %v301 = vunpack.c.l.b16 %v197
    %v302 = vunpack.c.h.b16 %v197
    %v303 = vunpack.c.l.b16 %v198
    %v304 = vunpack.c.h.b16 %v198
    %v305 = vunpack.c.l.b16 %v199
    %v306 = vunpack.c.h.b16 %v199
    %v307 = vunpack.c.l.b16 %v200
    %v308 = vunpack.c.h.b16 %v200
    %v309 = vpack.c.b16 %v247, %v245
    %v310 = vpack.c.b16 %v248, %v246
    %v311 = vpack.c.b16 %v251, %v249
    %v312 = vpack.c.b16 %v252, %v250
    %v313 = vpack.c.b16 %v255, %v253
    %v314 = vpack.c.b16 %v256, %v254
    %v315 = vpack.c.b16 %v259, %v257
    %v316 = vpack.c.b16 %v260, %v258
    %v317 = vpack.c.b16 %v263, %v261
    %v318 = vpack.c.b16 %v264, %v262
    %v319 = vpack.c.b16 %v267, %v265
    %v320 = vpack.c.b16 %v268, %v266
    %v321 = vpack.c.b16 %v271, %v269
    %v322 = vpack.c.b16 %v272, %v270
    %v323 = vpack.c.b16 %v275, %v273
    %v324 = vpack.c.b16 %v276, %v274
    %v325 = vpack.c.b16 %v279, %v277
    %v326 = vpack.c.b16 %v280, %v278
    %v327 = vpack.c.b16 %v283, %v281
    %v328 = vpack.c.b16 %v284, %v282
    %v329 = vpack.c.b16 %v287, %v285
    %v330 = vpack.c.b16 %v288, %v286
    %v331 = vpack.c.b16 %v291, %v289
    %v332 = vpack.c.b16 %v292, %v290
    %v333 = vpack.c.b16 %v295, %v293
    %v334 = vpack.c.b16 %v296, %v294
    %v335 = vpack.c.b16 %v299, %v297
    %v336 = vpack.c.b16 %v300, %v298
    %v337 = vpack.c.b16 %v303, %v301
    %v338 = vpack.c.b16 %v304, %v302
    %v339 = vpack.c.b16 %v307, %v305
    %v340 = vpack.c.b16 %v308, %v306
    %373 = vmatprep.subr.bf16.mxu0 %v310
    %374 = vmatpush1.bf16.msra.mxu0 %v309
    %375 = vmatprep.subr.bf16.mxu0 %v312
    %376 = vmatpush1.bf16.msra.mxu0 %v311
    %377 = vmatprep.subr.bf16.mxu0 %v314
    %378 = vmatpush1.bf16.msra.mxu0 %v313
    %379 = vmatprep.subr.bf16.mxu0 %v316
    %380 = vmatpush1.bf16.msra.mxu0 %v315
    %381 = vmatprep.subr.bf16.mxu0 %v318
    %382 = vmatpush1.bf16.msra.mxu0 %v317
    %383 = vmatprep.subr.bf16.mxu0 %v320
    %384 = vmatpush1.bf16.msra.mxu0 %v319
    %385 = vmatprep.subr.bf16.mxu0 %v322
    %386 = vmatpush1.bf16.msra.mxu0 %v321
    %387 = vmatprep.subr.bf16.mxu0 %v324
    %388 = vmatpush1.bf16.msra.mxu0 %v323
    %389 = vmatprep.subr.bf16.mxu0 %v326
    %390 = vmatpush1.bf16.msra.mxu0 %v325
    %391 = vmatprep.subr.bf16.mxu0 %v328
    %392 = vmatpush1.bf16.msra.mxu0 %v327
    %393 = vmatprep.subr.bf16.mxu0 %v330
    %394 = vmatpush1.bf16.msra.mxu0 %v329
    %395 = vmatprep.subr.bf16.mxu0 %v332
    %396 = vmatpush1.bf16.msra.mxu0 %v331
    %397 = vmatprep.subr.bf16.mxu0 %v334
    %398 = vmatpush1.bf16.msra.mxu0 %v333
    %399 = vmatprep.subr.bf16.mxu0 %v336
    %400 = vmatpush1.bf16.msra.mxu0 %v335
    %401 = vmatprep.subr.bf16.mxu0 %v338
    %402 = vmatpush1.bf16.msra.mxu0 %v337
    %403 = vmatprep.subr.bf16.mxu0 %v340
    %404 = vmatpush1.bf16.msra.mxu0 %v339
    %405 = vmatprep.mubr.bf16.mxu0 %v168
    %406 = vmatmul.mubr.bf16.gmra.mrb[0].mxu0 %v167
    %v407 = vpop.f32.mrb[0].mxu0
    %v408 = vadd.f32 %v206, %v407
    %v409 = vpop.f32.mrb[0].mxu0
    %v410 = vadd.f32 %v210, %v409
    %v411 = vpop.f32.mrb[0].mxu0
    %v412 = vpop.f32.mrb[0].mxu0
    %413 = vdwg.mxu0
    %v414 = vmax.f32 %v408, 0.0
    %v415 = vmax.f32 %v410, 0.0
    %v416 = vpack.c.bf16 %v414, %v414
    %v417 = vpack.c.bf16 %v415, %v415
    %v418 = vld [vmem:[#allocation10] sm:$0xff]
    %v419 = vld [vmem:[#allocation10 + $0x8] sm:$0xff]
    %v420 = vld [vmem:[#allocation10 + $0x10] sm:$0xff]
    %v421 = vld [vmem:[#allocation10 + $0x18] sm:$0xff]
    %v422 = vld [vmem:[#allocation10 + $0x20] sm:$0xff]
    %v423 = vld [vmem:[#allocation10 + $0x28] sm:$0xff]
    %v424 = vld [vmem:[#allocation10 + $0x30] sm:$0xff]
    %v425 = vld [vmem:[#allocation10 + $0x38] sm:$0xff]
    %v426 = vld [vmem:[#allocation10 + $0x40] sm:$0xff]
    %v427 = vld [vmem:[#allocation10 + $0x48] sm:$0xff]
    %v428 = vld [vmem:[#allocation10 + $0x50] sm:$0xff]
    %v429 = vld [vmem:[#allocation10 + $0x58] sm:$0xff]
    %v430 = vld [vmem:[#allocation10 + $0x60] sm:$0xff]
    %v431 = vld [vmem:[#allocation10 + $0x68] sm:$0xff]
    %v432 = vld [vmem:[#allocation10 + $0x70] sm:$0xff]
    %v433 = vld [vmem:[#allocation10 + $0x78] sm:$0xff]
    %v434 = vld [vmem:[#allocation10 + $0x80] sm:$0xff]
    %v435 = vld [vmem:[#allocation10 + $0x88] sm:$0xff]
    %v436 = vld [vmem:[#allocation10 + $0x90] sm:$0xff]
    %v437 = vld [vmem:[#allocation10 + $0x98] sm:$0xff]
    %v438 = vld [vmem:[#allocation10 + $0xa0] sm:$0xff]
    %v439 = vld [vmem:[#allocation10 + $0xa8] sm:$0xff]
    %v440 = vld [vmem:[#allocation10 + $0xb0] sm:$0xff]
    %v441 = vld [vmem:[#allocation10 + $0xb8] sm:$0xff]
    %v442 = vld [vmem:[#allocation10 + $0xc0] sm:$0xff]
    %v443 = vld [vmem:[#allocation10 + $0xc8] sm:$0xff]
    %v444 = vld [vmem:[#allocation10 + $0xd0] sm:$0xff]
    %v445 = vld [vmem:[#allocation10 + $0xd8] sm:$0xff]
    %v446 = vld [vmem:[#allocation10 + $0xe0] sm:$0xff]
    %v447 = vld [vmem:[#allocation10 + $0xe8] sm:$0xff]
    %v448 = vld [vmem:[#allocation10 + $0xf0] sm:$0xff]
    %v449 = vld [vmem:[#allocation10 + $0xf8] sm:$0xff]
    %v450 = vld [vmem:[%s7] sm:$0x3]
    %v452 = vlaneseq
    %v453 = vshrl.u32 %v452, 7
    %v454 = vsub.s32 0, %v453
    %v455 = vrot.slane %v450, %v454
    %v456 = vlaneseq
    %v457 = vshrl.u32 %v456, 7
    %v458 = vsub.s32 1, %v457
    %v459 = vrot.slane %v450, %v458
    %v494 = vunpack.c.l.b16 %v418
    %v495 = vunpack.c.h.b16 %v418
    %v496 = vunpack.c.l.b16 %v419
    %v497 = vunpack.c.h.b16 %v419
    %v498 = vunpack.c.l.b16 %v420
    %v499 = vunpack.c.h.b16 %v420
    %v500 = vunpack.c.l.b16 %v421
    %v501 = vunpack.c.h.b16 %v421
    %v502 = vunpack.c.l.b16 %v422
    %v503 = vunpack.c.h.b16 %v422
    %v504 = vunpack.c.l.b16 %v423
    %v505 = vunpack.c.h.b16 %v423
    %v506 = vunpack.c.l.b16 %v424
    %v507 = vunpack.c.h.b16 %v424
    %v508 = vunpack.c.l.b16 %v425
    %v509 = vunpack.c.h.b16 %v425
    %v510 = vunpack.c.l.b16 %v426
    %v511 = vunpack.c.h.b16 %v426
    %v512 = vunpack.c.l.b16 %v427
    %v513 = vunpack.c.h.b16 %v427
    %v514 = vunpack.c.l.b16 %v428
    %v515 = vunpack.c.h.b16 %v428
    %v516 = vunpack.c.l.b16 %v429
    %v517 = vunpack.c.h.b16 %v429
    %v518 = vunpack.c.l.b16 %v430
    %v519 = vunpack.c.h.b16 %v430
    %v520 = vunpack.c.l.b16 %v431
    %v521 = vunpack.c.h.b16 %v431
    %v522 = vunpack.c.l.b16 %v432
    %v523 = vunpack.c.h.b16 %v432
    %v524 = vunpack.c.l.b16 %v433
    %v525 = vunpack.c.h.b16 %v433
    %v526 = vunpack.c.l.b16 %v434
    %v527 = vunpack.c.h.b16 %v434
    %v528 = vunpack.c.l.b16 %v435
    %v529 = vunpack.c.h.b16 %v435
    %v530 = vunpack.c.l.b16 %v436
    %v531 = vunpack.c.h.b16 %v436
    %v532 = vunpack.c.l.b16 %v437
    %v533 = vunpack.c.h.b16 %v437
    %v534 = vunpack.c.l.b16 %v438
    %v535 = vunpack.c.h.b16 %v438
    %v536 = vunpack.c.l.b16 %v439
    %v537 = vunpack.c.h.b16 %v439
    %v538 = vunpack.c.l.b16 %v440
    %v539 = vunpack.c.h.b16 %v440
    %v540 = vunpack.c.l.b16 %v441
    %v541 = vunpack.c.h.b16 %v441
    %v542 = vunpack.c.l.b16 %v442
    %v543 = vunpack.c.h.b16 %v442
    %v544 = vunpack.c.l.b16 %v443
    %v545 = vunpack.c.h.b16 %v443
    %v546 = vunpack.c.l.b16 %v444
    %v547 = vunpack.c.h.b16 %v444
    %v548 = vunpack.c.l.b16 %v445
    %v549 = vunpack.c.h.b16 %v445
    %v550 = vunpack.c.l.b16 %v446
    %v551 = vunpack.c.h.b16 %v446
    %v552 = vunpack.c.l.b16 %v447
    %v553 = vunpack.c.h.b16 %v447
    %v554 = vunpack.c.l.b16 %v448
    %v555 = vunpack.c.h.b16 %v448
    %v556 = vunpack.c.l.b16 %v449
    %v557 = vunpack.c.h.b16 %v449
    %v558 = vpack.c.b16 %v496, %v494
    %v559 = vpack.c.b16 %v497, %v495
    %v560 = vpack.c.b16 %v500, %v498
    %v561 = vpack.c.b16 %v501, %v499
    %v562 = vpack.c.b16 %v504, %v502
    %v563 = vpack.c.b16 %v505, %v503
    %v564 = vpack.c.b16 %v508, %v506
    %v565 = vpack.c.b16 %v509, %v507
    %v566 = vpack.c.b16 %v512, %v510
    %v567 = vpack.c.b16 %v513, %v511
    %v568 = vpack.c.b16 %v516, %v514
    %v569 = vpack.c.b16 %v517, %v515
    %v570 = vpack.c.b16 %v520, %v518
    %v571 = vpack.c.b16 %v521, %v519
    %v572 = vpack.c.b16 %v524, %v522
    %v573 = vpack.c.b16 %v525, %v523
    %v574 = vpack.c.b16 %v528, %v526
    %v575 = vpack.c.b16 %v529, %v527
    %v576 = vpack.c.b16 %v532, %v530
    %v577 = vpack.c.b16 %v533, %v531
    %v578 = vpack.c.b16 %v536, %v534
    %v579 = vpack.c.b16 %v537, %v535
    %v580 = vpack.c.b16 %v540, %v538
    %v581 = vpack.c.b16 %v541, %v539
    %v582 = vpack.c.b16 %v544, %v542
    %v583 = vpack.c.b16 %v545, %v543
    %v584 = vpack.c.b16 %v548, %v546
    %v585 = vpack.c.b16 %v549, %v547
    %v586 = vpack.c.b16 %v552, %v550
    %v587 = vpack.c.b16 %v553, %v551
    %v588 = vpack.c.b16 %v556, %v554
    %v589 = vpack.c.b16 %v557, %v555
    %622 = vmatprep.subr.bf16.mxu0 %v559
    %623 = vmatpush1.bf16.msra.mxu0 %v558
    %624 = vmatprep.subr.bf16.mxu0 %v561
    %625 = vmatpush1.bf16.msra.mxu0 %v560
    %626 = vmatprep.subr.bf16.mxu0 %v563
    %627 = vmatpush1.bf16.msra.mxu0 %v562
    %628 = vmatprep.subr.bf16.mxu0 %v565
    %629 = vmatpush1.bf16.msra.mxu0 %v564
    %630 = vmatprep.subr.bf16.mxu0 %v567
    %631 = vmatpush1.bf16.msra.mxu0 %v566
    %632 = vmatprep.subr.bf16.mxu0 %v569
    %633 = vmatpush1.bf16.msra.mxu0 %v568
    %634 = vmatprep.subr.bf16.mxu0 %v571
    %635 = vmatpush1.bf16.msra.mxu0 %v570
    %636 = vmatprep.subr.bf16.mxu0 %v573
    %637 = vmatpush1.bf16.msra.mxu0 %v572
    %638 = vmatprep.subr.bf16.mxu0 %v575
    %639 = vmatpush1.bf16.msra.mxu0 %v574
    %640 = vmatprep.subr.bf16.mxu0 %v577
    %641 = vmatpush1.bf16.msra.mxu0 %v576
    %642 = vmatprep.subr.bf16.mxu0 %v579
    %643 = vmatpush1.bf16.msra.mxu0 %v578
    %644 = vmatprep.subr.bf16.mxu0 %v581
    %645 = vmatpush1.bf16.msra.mxu0 %v580
    %646 = vmatprep.subr.bf16.mxu0 %v583
    %647 = vmatpush1.bf16.msra.mxu0 %v582
    %648 = vmatprep.subr.bf16.mxu0 %v585
    %649 = vmatpush1.bf16.msra.mxu0 %v584
    %650 = vmatprep.subr.bf16.mxu0 %v587
    %651 = vmatpush1.bf16.msra.mxu0 %v586
    %652 = vmatprep.subr.bf16.mxu0 %v589
    %653 = vmatpush1.bf16.msra.mxu0 %v588
    %654 = vmatprep.mubr.bf16.mxu0 %v417
    %655 = vmatmul.mubr.bf16.gmra.mrb[0].mxu0 %v416
    %v656 = vpop.f32.mrb[0].mxu0
    %v657 = vadd.f32 %v455, %v656
    %v658 = vpop.f32.mrb[0].mxu0
    %v659 = vadd.f32 %v459, %v658
    %v660 = vpop.f32.mrb[0].mxu0
    %v661 = vpop.f32.mrb[0].mxu0
    %662 = vdwg.mxu0
    %v663 = vmax.f32 %v659, -20.0
    %v664 = vmin.f32 %v663, 2.0
    %v665 = vmul.f32 %v664, 1.442695
    %v666 = vpow.pop %v665
    %v667 = vld [vmem:[#allocation5] sm:$0xff]
    %v668 = vmul.f32 %v666, %v667
    %v669 = vadd.f32 %v657, %v668
    %v670 = vtanh.pop %v669
    %v671 = vmul.f32 %v667, %v667
    %v672 = vmul.f32 %v671, -0.5
    %v673 = vsub.f32 %v672, %v664
    %v674 = vsub.f32 %v673, 0.9189385
    %v675 = vsub.f32 0.6931472, %v669
    %v676 = vmul.f32 %v669, -2.0
    %v677 = vmax.f32 %v676, 0.0
    %vm678 = vcmp.ne.f32.partialorder %v676, %v676
    %v679 = vadd.f32 %v676, 0.0
    %v680 = vand.u32 2147483647, %v676
    %v681 = vsub.f32 0.0, %v680
    %v682 = vmul.f32 %v681, 1.442695
    %v683 = vpow.pop %v682
    %v684 = vadd.f32 %v683, 1.0
    %v685 = vlog2.pop %v684
    %v686 = vmul.f32 %v685, 0.6931472
    %v687 = vmul.f32 -0.5, %v683
    %v688 = vadd.f32 %v687, 1.0
    %v689 = vmul.f32 %v688, %v683
    %v690 = vand.u32 2147483647, %v683
    %vm691 = vcmp.lt.f32.partialorder %v690, 0.0004427343
    %v692 = vsel %vm691, %v689, %v686
    %v693 = vadd.f32 %v677, %v692
    %v694 = vsel %vm678, %v679, %v693
    %v695 = vsub.f32 %v675, %v694
    %v696 = vmul.f32 %v695, 2.0
    %v697 = vlaneseq
    %v698 = vand.u32 %v697, 127
    %vm699 = vcmp.lt.s32.totalorder %v698, 4
    %v700 = vsub.f32 %v674, %v696
    %v701 = vsel %vm699, %v700, 0.0
    %702 = vadd.xlane.f32.xlu0 %v701
    %v703 = vpop.xlane.xlu0 %702
    %v704 = vsel %vm699, %v670, %v703
    %705 = vst [vmem:[#allocation11] sm:$0xff] %v704
    // Predicated region
    $region54: #{tpu_custom_call.1} parent=1 // pred_check
      _
    $region55: #{tpu_custom_call.1} parent=1 // pred_check_branch
      %707 = sbr.rel (0) target = $region57
    $region56: #{tpu_custom_call.1} parent=1 // pred_region
      %s709 = ssub.s32 128, 128
      %710 = vsyncadd [#allocation4], %s709
      %s712 = sshll.u32 [#allocation11], 4
      %s713 = int_to_ptr.vmem [resolvable:$true] %s712
      %715 = dma.vmem_to_hbm [thread:$0]  %s713, 128, %s8, [#allocation4]
    $region57: #{tpu_custom_call.1} parent=1 // pred_fallthru
      _
    // Predicated region
    $region58: #{tpu_custom_call.1} parent=1 // pred_check
      _
    $region59: #{tpu_custom_call.1} parent=1 // pred_check_branch
      %717 = sbr.rel (0) target = $region61
    $region60: #{tpu_custom_call.1} parent=1 // pred_region
      %718 = dma.done [#allocation4], 128
    $region61: #{tpu_custom_call.1} parent=1 // pred_fallthru
      _
    %719 = vsyncpa [#allocation3], 1
    %720 = vsyncpa [#allocation6], 1
    %721 = vsyncpa [#allocation9], 1
    %722 = vsyncpa [#allocation4], 1

</llo_original>
